<compile_context>
chip_gen: v6e
topology: v6e:2x2x1
jax: 0.10.0
libtpu: 0.0.40
codegen_flags: <defaults>
</compile_context>

<pallas_src>
import functools

import jax
import jax.numpy as jnp
from jax.experimental import pallas as pl
from jax.experimental.pallas import tpu as pltpu

HIDDEN = 128   # hidden width of the tutorial DQN
LANE = 128     # TPU lane width (used to pad w3 / pack biases)


def _round_up(x, m):
    return (x + m - 1) // m * m


def dqn_mlp_kernel(x_ref, w1_ref, w2_ref, w3_ref, b_ref, o_ref):
    """Fused 3-layer MLP for one batch tile.

    x_ref:  [TB, n_obs]       f32   (streamed per grid step)
    w1_ref: [n_obs, 128]      f32   (VMEM-resident)
    w2_ref: [128, 128]        bf16  (VMEM-resident)
    w3_ref: [128, 128]        bf16  (VMEM-resident; cols >= n_actions are zero)
    b_ref:  [3, 128]          f32   (rows: b1, b2, b3-padded)
    o_ref:  [TB, n_actions]   f32   (narrow output; OOB rows of a partial block
                                     are masked on store)
    """
    n_obs = x_ref.shape[1]
    n_act = o_ref.shape[1]

    x = x_ref[...]            # f32
    w1 = w1_ref[...]          # f32
    b = b_ref[...]            # f32 [3, 128]

    # ---- Layer 1: Linear(n_obs -> 128) + ReLU -------------------------------
    # n_obs is tiny (e.g. 4 for CartPole): an unrolled VPU broadcast multiply-add
    # is cheaper and avoids padding x / a tiny-K MXU pass.  (Static trace-time
    # branch keeps an MXU fallback for wider observation vectors.)
    if n_obs <= 16:
        h1 = x[:, 0:1] * w1[0:1, :]
        for k in range(1, n_obs):
            h1 = h1 + x[:, k:k + 1] * w1[k:k + 1, :]
    else:
        h1 = jnp.dot(x, w1, preferred_element_type=jnp.float32)
    h1 = jnp.maximum(h1 + b[0:1, :], 0.0).astype(jnp.bfloat16)

    # ---- Layer 2: Linear(128 -> 128) + ReLU (MXU, bf16 in / f32 accum) ------
    h2 = jnp.dot(h1, w2_ref[...], preferred_element_type=jnp.float32)
    h2 = jnp.maximum(h2 + b[1:2, :], 0.0).astype(jnp.bfloat16)

    # ---- Layer 3: Linear(128 -> n_actions), no activation --------------------
    # w3 is 128-lane padded so the matmul stays MXU-aligned; only the real
    # action columns are written back (narrow HBM store).
    out = jnp.dot(h2, w3_ref[...], preferred_element_type=jnp.float32)
    o_ref[...] = (out[:, :n_act] + b[2:3, :n_act]).astype(o_ref.dtype)


@functools.partial(jax.jit, static_argnames=("tb",))
def dqn_forward(x, params, *, tb=2048):
    """x: [B, n_obs] float32; params: dict of w1,b1,w2,b2,w3,b3 (weights [in, out])."""
    B, n_obs = x.shape
    hidden = params["w2"].shape[0]
    n_actions = params["w3"].shape[1]

    # Fail loudly on non-tutorial sizes instead of silently computing garbage.
    assert hidden == HIDDEN == LANE, "DQN_NN_Tutorial assumes 128-wide hidden layers"
    assert params["w1"].shape == (n_obs, HIDDEN)
    assert params["w2"].shape == (HIDDEN, HIDDEN)
    assert params["w3"].shape == (HIDDEN, n_actions)
    assert n_actions <= LANE, "bias/w3 packing assumes n_actions <= 128"

    x = x.astype(jnp.float32)

    # Weights: w1 stays f32 (VPU layer-1 path); w2/w3 go bf16 for the MXU.
    # w3 is column-padded to a full 128-lane slab so its matmul is MXU-aligned.
    w1 = params["w1"].astype(jnp.float32)
    w2 = params["w2"].astype(jnp.bfloat16)
    w3 = jnp.zeros((HIDDEN, LANE), jnp.bfloat16).at[:, :n_actions].set(
        params["w3"].astype(jnp.bfloat16))

    # Pack all three biases into one [3, 128] f32 array (single small DMA).
    bias = jnp.zeros((3, LANE), jnp.float32)
    bias = bias.at[0, :].set(params["b1"].astype(jnp.float32))
    bias = bias.at[1, :].set(params["b2"].astype(jnp.float32))
    bias = bias.at[2, :n_actions].set(params["b3"].astype(jnp.float32))

    # Batch tiling: target >= 4 grid steps (v7x megacore split + pipelining),
    # cap the tile at `tb` rows (2048 default amortizes per-step overhead at
    # large B while keeping VMEM use tiny).  The last block may be partial;
    # its OOB stores are masked by Pallas.
    tb_eff = max(16, min(tb, _round_up(-(-B // 4), 16)))
    grid = (pl.cdiv(B, tb_eff),)

    return pl.pallas_call(
        dqn_mlp_kernel,
        out_shape=jax.ShapeDtypeStruct((B, n_actions), jnp.float32),
        grid=grid,
        in_specs=[
            pl.BlockSpec((tb_eff, n_obs), lambda i: (i, 0)),     # x: streams per tile
            pl.BlockSpec((n_obs, HIDDEN), lambda i: (0, 0)),     # w1: VMEM-resident
            pl.BlockSpec((HIDDEN, HIDDEN), lambda i: (0, 0)),    # w2: VMEM-resident
            pl.BlockSpec((HIDDEN, LANE), lambda i: (0, 0)),      # w3: VMEM-resident
            pl.BlockSpec((3, LANE), lambda i: (0, 0)),           # packed biases
        ],
        out_specs=pl.BlockSpec((tb_eff, n_actions), lambda i: (i, 0)),
        compiler_params=pltpu.CompilerParams(
            dimension_semantics=("parallel",)),                  # megacore on v7x
    )(x, w1, w2, w3, bias)


def init_params(key, n_observations, n_actions, hidden=HIDDEN):
    """Deterministic init mimicking nn.Linear's U(-1/sqrt(fan_in), 1/sqrt(fan_in)).

    Weights are stored [in, out] (already transposed vs. PyTorch)."""
    ks = jax.random.split(key, 6)

    def linear(kw, kb, fan_in, fan_out):
        bound = 1.0 / jnp.sqrt(fan_in)
        w = jax.random.uniform(kw, (fan_in, fan_out), jnp.float32, -bound, bound)
        b = jax.random.uniform(kb, (fan_out,), jnp.float32, -bound, bound)
        return w, b

    w1, b1 = linear(ks[0], ks[1], n_observations, hidden)
    w2, b2 = linear(ks[2], ks[3], hidden, hidden)
    w3, b3 = linear(ks[4], ks[5], hidden, n_actions)
    return {"w1": w1, "b1": b1, "w2": w2, "b2": b2, "w3": w3, "b3": b3}


if __name__ == "__main__":
    # CartPole-like DQN shapes: 4 observations, 2 actions.  B=50 is deliberately
    # NOT a multiple of the 16-row tile so the run exercises a 4-step "parallel"
    # batch grid with a masked partial last block.
    B, n_obs, n_actions = 50, 4, 2

    key = jax.random.PRNGKey(0)
    pkey, xkey = jax.random.split(key)
    params = init_params(pkey, n_obs, n_actions)
    x = jax.random.normal(xkey, (B, n_obs), dtype=jnp.float32)

    out = jax.block_until_ready(dqn_forward(x, params))

    # Reference in plain JAX with the same precision recipe as the kernel:
    # layer 1 in f32, layers 2/3 with bf16 inputs and f32 accumulation.
    def ref(x, p):
        h = jnp.dot(x, p["w1"]) + p["b1"]
        h = jnp.maximum(h, 0.0).astype(jnp.bfloat16)
        h = jnp.dot(h, p["w2"].astype(jnp.bfloat16),
                    preferred_element_type=jnp.float32) + p["b2"]
        h = jnp.maximum(h, 0.0).astype(jnp.bfloat16)
        return jnp.dot(h, p["w3"].astype(jnp.bfloat16),
                       preferred_element_type=jnp.float32) + p["b3"]

    expected = ref(x, params)
    assert out.shape == (B, n_actions)
    max_err = float(jnp.max(jnp.abs(out - expected)))
    assert jnp.allclose(out, expected, atol=2e-3, rtol=2e-3), max_err

    print("KERNEL_OK")
</pallas_src>

<mosaic_0001>
module attributes {stable_mosaic.version = 11 : i64} {
  func.func @dqn_mlp_kernel(%arg0: i32, %arg1: memref<16x4xf32, #tpu.memory_space<vmem>>, %arg2: memref<4x128xf32, #tpu.memory_space<vmem>>, %arg3: memref<128x128xbf16, #tpu.memory_space<vmem>>, %arg4: memref<128x128xbf16, #tpu.memory_space<vmem>>, %arg5: memref<3x128xf32, #tpu.memory_space<vmem>>, %arg6: memref<16x2xf32, #tpu.memory_space<vmem>>) attributes {dimension_semantics = [#tpu.dimension_semantics<parallel>], iteration_bounds = array<i64: 4>, scalar_prefetch = 0 : i64, scratch_operands = 0 : i64, tpu.core_type = #tpu.core_type<tc>, window_params = [{transform_indices = @transform_0, window_bounds = array<i64: 16, 4>}, {pipeline_mode = #tpu.pipeline_mode<synchronous>, transform_indices = @transform_1, window_bounds = array<i64: 4, 128>}, {pipeline_mode = #tpu.pipeline_mode<synchronous>, transform_indices = @transform_2, window_bounds = array<i64: 128, 128>}, {pipeline_mode = #tpu.pipeline_mode<synchronous>, transform_indices = @transform_3, window_bounds = array<i64: 128, 128>}, {pipeline_mode = #tpu.pipeline_mode<synchronous>, transform_indices = @transform_4, window_bounds = array<i64: 3, 128>}, {transform_indices = @transform_5, window_bounds = array<i64: 16, 2>}]} {
    %c0 = arith.constant 0 : index
    %c0_0 = arith.constant 0 : index
    %0 = vector.load %arg1[%c0, %c0_0] : memref<16x4xf32, #tpu.memory_space<vmem>>, vector<16x4xf32>
    %c0_1 = arith.constant 0 : index
    %c0_2 = arith.constant 0 : index
    %1 = vector.load %arg2[%c0_1, %c0_2] : memref<4x128xf32, #tpu.memory_space<vmem>>, vector<4x128xf32>
    %c0_3 = arith.constant 0 : index
    %c0_4 = arith.constant 0 : index
    %2 = vector.load %arg5[%c0_3, %c0_4] : memref<3x128xf32, #tpu.memory_space<vmem>>, vector<3x128xf32>
    %3 = vector.extract_strided_slice %0 {offsets = [0, 0], sizes = [16, 1], strides = [1, 1]} : vector<16x4xf32> to vector<16x1xf32>
    %4 = vector.extract_strided_slice %1 {offsets = [0, 0], sizes = [1, 128], strides = [1, 1]} : vector<4x128xf32> to vector<1x128xf32>
    %5 = vector.broadcast %3 : vector<16x1xf32> to vector<16x128xf32>
    %6 = vector.broadcast %4 : vector<1x128xf32> to vector<16x128xf32>
    %7 = arith.mulf %5, %6 : vector<16x128xf32>
    %8 = vector.extract_strided_slice %0 {offsets = [0, 1], sizes = [16, 1], strides = [1, 1]} : vector<16x4xf32> to vector<16x1xf32>
    %9 = vector.extract_strided_slice %1 {offsets = [1, 0], sizes = [1, 128], strides = [1, 1]} : vector<4x128xf32> to vector<1x128xf32>
    %10 = vector.broadcast %8 : vector<16x1xf32> to vector<16x128xf32>
    %11 = vector.broadcast %9 : vector<1x128xf32> to vector<16x128xf32>
    %12 = arith.mulf %10, %11 : vector<16x128xf32>
    %13 = arith.addf %7, %12 : vector<16x128xf32>
    %14 = vector.extract_strided_slice %0 {offsets = [0, 2], sizes = [16, 1], strides = [1, 1]} : vector<16x4xf32> to vector<16x1xf32>
    %15 = vector.extract_strided_slice %1 {offsets = [2, 0], sizes = [1, 128], strides = [1, 1]} : vector<4x128xf32> to vector<1x128xf32>
    %16 = vector.broadcast %14 : vector<16x1xf32> to vector<16x128xf32>
    %17 = vector.broadcast %15 : vector<1x128xf32> to vector<16x128xf32>
    %18 = arith.mulf %16, %17 : vector<16x128xf32>
    %19 = arith.addf %13, %18 : vector<16x128xf32>
    %20 = vector.extract_strided_slice %0 {offsets = [0, 3], sizes = [16, 1], strides = [1, 1]} : vector<16x4xf32> to vector<16x1xf32>
    %21 = vector.extract_strided_slice %1 {offsets = [3, 0], sizes = [1, 128], strides = [1, 1]} : vector<4x128xf32> to vector<1x128xf32>
    %22 = vector.broadcast %20 : vector<16x1xf32> to vector<16x128xf32>
    %23 = vector.broadcast %21 : vector<1x128xf32> to vector<16x128xf32>
    %24 = arith.mulf %22, %23 : vector<16x128xf32>
    %25 = arith.addf %19, %24 : vector<16x128xf32>
    %26 = vector.extract_strided_slice %2 {offsets = [0, 0], sizes = [1, 128], strides = [1, 1]} : vector<3x128xf32> to vector<1x128xf32>
    %27 = vector.broadcast %26 : vector<1x128xf32> to vector<16x128xf32>
    %28 = arith.addf %25, %27 : vector<16x128xf32>
    %cst = arith.constant 0.000000e+00 : f32
    %29 = vector.broadcast %cst : f32 to vector<16x128xf32>
    %30 = arith.maximumf %28, %29 : vector<16x128xf32>
    %31 = arith.truncf %30 : vector<16x128xf32> to vector<16x128xbf16>
    %c0_5 = arith.constant 0 : index
    %c0_6 = arith.constant 0 : index
    %32 = vector.load %arg3[%c0_5, %c0_6] : memref<128x128xbf16, #tpu.memory_space<vmem>>, vector<128x128xbf16>
    %cst_7 = arith.constant dense<0.000000e+00> : vector<16x128xf32>
    %33 = tpu.matmul %31, %32, %cst_7 {dimension_numbers = #tpu.dot_dimension_numbers<[1], [0], [0], [1], [0, 0, 1, 1], [], []>} : vector<16x128xbf16>, vector<128x128xbf16>, vector<16x128xf32> -> vector<16x128xf32>
    %34 = vector.extract_strided_slice %2 {offsets = [1, 0], sizes = [1, 128], strides = [1, 1]} : vector<3x128xf32> to vector<1x128xf32>
    %35 = vector.broadcast %34 : vector<1x128xf32> to vector<16x128xf32>
    %36 = arith.addf %33, %35 : vector<16x128xf32>
    %cst_8 = arith.constant 0.000000e+00 : f32
    %37 = vector.broadcast %cst_8 : f32 to vector<16x128xf32>
    %38 = arith.maximumf %36, %37 : vector<16x128xf32>
    %39 = arith.truncf %38 : vector<16x128xf32> to vector<16x128xbf16>
    %c0_9 = arith.constant 0 : index
    %c0_10 = arith.constant 0 : index
    %40 = vector.load %arg4[%c0_9, %c0_10] : memref<128x128xbf16, #tpu.memory_space<vmem>>, vector<128x128xbf16>
    %cst_11 = arith.constant dense<0.000000e+00> : vector<16x128xf32>
    %41 = tpu.matmul %39, %40, %cst_11 {dimension_numbers = #tpu.dot_dimension_numbers<[1], [0], [0], [1], [0, 0, 1, 1], [], []>} : vector<16x128xbf16>, vector<128x128xbf16>, vector<16x128xf32> -> vector<16x128xf32>
    %42 = vector.extract_strided_slice %41 {offsets = [0, 0], sizes = [16, 2], strides = [1, 1]} : vector<16x128xf32> to vector<16x2xf32>
    %43 = vector.extract_strided_slice %2 {offsets = [2, 0], sizes = [1, 2], strides = [1, 1]} : vector<3x128xf32> to vector<1x2xf32>
    %44 = vector.broadcast %43 : vector<1x2xf32> to vector<16x2xf32>
    %45 = arith.addf %42, %44 : vector<16x2xf32>
    %c0_12 = arith.constant 0 : index
    %c0_13 = arith.constant 0 : index
    %46 = vector.load %arg6[%c0_12, %c0_13] : memref<16x2xf32, #tpu.memory_space<vmem>>, vector<16x2xf32>
    tpu.vector_store %arg6[%c0_12, %c0_13], %45 {strides = array<i32>} : memref<16x2xf32, #tpu.memory_space<vmem>>, vector<16x2xf32>,
    return
  }
  func.func @transform_0(%arg0: i32) -> (i32, i32) {
    %c0_i32 = arith.constant 0 : i32
    %c0_i32_0 = arith.constant 0 : i32
    return %arg0, %c0_i32 : i32, i32
  }
  func.func @transform_1(%arg0: i32) -> (i32, i32) {
    %c0_i32 = arith.constant 0 : i32
    %c0_i32_0 = arith.constant 0 : i32
    %c0_i32_1 = arith.constant 0 : i32
    return %c0_i32, %c0_i32_0 : i32, i32
  }
  func.func @transform_2(%arg0: i32) -> (i32, i32) {
    %c0_i32 = arith.constant 0 : i32
    %c0_i32_0 = arith.constant 0 : i32
    %c0_i32_1 = arith.constant 0 : i32
    return %c0_i32, %c0_i32_0 : i32, i32
  }
  func.func @transform_3(%arg0: i32) -> (i32, i32) {
    %c0_i32 = arith.constant 0 : i32
    %c0_i32_0 = arith.constant 0 : i32
    %c0_i32_1 = arith.constant 0 : i32
    return %c0_i32, %c0_i32_0 : i32, i32
  }
  func.func @transform_4(%arg0: i32) -> (i32, i32) {
    %c0_i32 = arith.constant 0 : i32
    %c0_i32_0 = arith.constant 0 : i32
    %c0_i32_1 = arith.constant 0 : i32
    return %c0_i32, %c0_i32_0 : i32, i32
  }
  func.func @transform_5(%arg0: i32) -> (i32, i32) {
    %c0_i32 = arith.constant 0 : i32
    %c0_i32_0 = arith.constant 0 : i32
    return %arg0, %c0_i32 : i32, i32
  }
}

</mosaic_0001>

<llo_original>
// kernel: dqn_forward.1
$region0: #{dqn_forward.1}
  #allocation0 [shape = 'u32[]', space=smem, size = 0x4, offset = 0x4, fixed_abs, tag = 'smem constant byte address 0x4 - core index']
  #allocation1 [shape = 'u32[144,128]{1,0:T(1,128)}', space=vmem, size = 0x12000, scoped, tag = 'internal scratch']
  %s0 = inlined_call_operand.vmem [shape: f32[50,4], index: 0, kind: input, shape index: {}]
  %s1 = inlined_call_operand.vmem [shape: f32[4,128], index: 1, kind: input, shape index: {}]
  %s2 = inlined_call_operand.vmem [shape: bf16[128,128], index: 2, kind: input, shape index: {}]
  %s3 = inlined_call_operand.vmem [shape: bf16[128,128], index: 3, kind: input, shape index: {}]
  %s4 = inlined_call_operand.vmem [shape: f32[3,128], index: 4, kind: input, shape index: {}]
  %s5 = inlined_call_operand.vmem [shape: f32[50,2], index: 5, kind: output, shape index: {}]
  %s6 = sld [smem:[#allocation0]]
  $region101: #{dqn_forward.1} parent=0
    _
  %s8 = ssub.s32 1, %s6
  %s9 = scalar_select 0, %s8, %s6
  $region1: #{dqn_forward.1} parent=0
    #allocation2 [shape = 'u8[16384]{0}', space=vmem, size = 0x4000, scoped, tag = 'output window, operand 0']
    loop: start=0, step=1, limit=6
    $region2: #{dqn_forward.1} parent=1 // loop_pre_header
      _
    $region3: #{dqn_forward.1} parent=1 // loop_header
      %s11 = sphi 0, %s15
      %p12 = scmp.ge.s32.totalorder %s11, 6
      %s21 = sphi 0, %s23
      %s24 = sphi 0, %s21
      %s25 = sphi 0, %s24
      %s41 = sphi 0, %s25
      %s45 = sphi 0, %s45
      %s47 = sphi 0, %s45
      %s48 = sphi 0, %s47
      %s62 = sphi 0, %s48
      %s66 = sphi 0, %s66
      %s68 = sphi 0, %s66
      %s69 = sphi 0, %s68
      %s83 = sphi 0, %s69
      %s87 = sphi 0, %s87
      %s89 = sphi 0, %s87
      %s90 = sphi 0, %s89
      %s104 = sphi 0, %s90
      %s108 = sphi 0, %s108
      %s110 = sphi 0, %s108
      %s111 = sphi 0, %s110
      %s125 = sphi 0, %s111
      %s131 = sphi 0, %s133
      %s134 = sphi 0, %s131
      %s135 = sphi 0, %s134
      %s151 = sphi 0, %s135
    $region4: #{dqn_forward.1} parent=1 // loop_header_branch
      %14 = sbr.rel (%p12) target = $region8
    $region5: #{dqn_forward.1} parent=1 // loop_body
      %s16 = ssub.s32 %s11, 1
      %s17 = ssub.s32 %s11, 2
      %s18 = sadd.s32 %s11, 1
      %s19 = ssub.s32 %s11, %s18
      %p20 = scmp.eq.s32.totalorder %s19, 0
      %s22 = sadd.s32 %s21, 1
      %s23 = scalar_select %p20, %s21, %s22
      %p26 = pneg %p20
      %p27 = scmp.eq.s32.totalorder %s11, 3
      %p28 = por %p26, %p27
      %p29 = scmp.ne.s32.totalorder %s21, %s24
      %p30 = scmp.eq.s32.totalorder %s11, 0
      %p31 = por %p29, %p30
      %p32 = scmp.ne.s32.totalorder %s21, %s24
      %p33 = scmp.eq.s32.totalorder %s16, 3
      %p34 = por %p32, %p33
      %p35 = scmp.ne.s32.totalorder %s24, %s25
      %p36 = scmp.eq.s32.totalorder %s16, 0
      %p37 = por %p35, %p36
      %p38 = scmp.ne.s32.totalorder %s24, %s25
      %p39 = scmp.eq.s32.totalorder %s17, 3
      %p40 = por %p38, %p39
      %p42 = scmp.ne.s32.totalorder %s25, %s41
      %p43 = scmp.eq.s32.totalorder %s17, 0
      %p44 = por %p42, %p43
      %s46 = sadd.s32 %s45, 1
      %p49 = scmp.eq.s32.totalorder %s11, 3
      %p50 = scmp.ne.s32.totalorder %s45, %s47
      %p51 = scmp.eq.s32.totalorder %s11, 0
      %p52 = por %p50, %p51
      %p53 = scmp.ne.s32.totalorder %s45, %s47
      %p54 = scmp.eq.s32.totalorder %s16, 3
      %p55 = por %p53, %p54
      %p56 = scmp.ne.s32.totalorder %s47, %s48
      %p57 = scmp.eq.s32.totalorder %s16, 0
      %p58 = por %p56, %p57
      %p59 = scmp.ne.s32.totalorder %s47, %s48
      %p60 = scmp.eq.s32.totalorder %s17, 3
      %p61 = por %p59, %p60
      %p63 = scmp.ne.s32.totalorder %s48, %s62
      %p64 = scmp.eq.s32.totalorder %s17, 0
      %p65 = por %p63, %p64
      %s67 = sadd.s32 %s66, 1
      %p70 = scmp.eq.s32.totalorder %s11, 3
      %p71 = scmp.ne.s32.totalorder %s66, %s68
      %p72 = scmp.eq.s32.totalorder %s11, 0
      %p73 = por %p71, %p72
      %p74 = scmp.ne.s32.totalorder %s66, %s68
      %p75 = scmp.eq.s32.totalorder %s16, 3
      %p76 = por %p74, %p75
      %p77 = scmp.ne.s32.totalorder %s68, %s69
      %p78 = scmp.eq.s32.totalorder %s16, 0
      %p79 = por %p77, %p78
      %p80 = scmp.ne.s32.totalorder %s68, %s69
      %p81 = scmp.eq.s32.totalorder %s17, 3
      %p82 = por %p80, %p81
      %p84 = scmp.ne.s32.totalorder %s69, %s83
      %p85 = scmp.eq.s32.totalorder %s17, 0
      %p86 = por %p84, %p85
      %s88 = sadd.s32 %s87, 1
      %p91 = scmp.eq.s32.totalorder %s11, 3
      %p92 = scmp.ne.s32.totalorder %s87, %s89
      %p93 = scmp.eq.s32.totalorder %s11, 0
      %p94 = por %p92, %p93
      %p95 = scmp.ne.s32.totalorder %s87, %s89
      %p96 = scmp.eq.s32.totalorder %s16, 3
      %p97 = por %p95, %p96
      %p98 = scmp.ne.s32.totalorder %s89, %s90
      %p99 = scmp.eq.s32.totalorder %s16, 0
      %p100 = por %p98, %p99
      %p101 = scmp.ne.s32.totalorder %s89, %s90
      %p102 = scmp.eq.s32.totalorder %s17, 3
      %p103 = por %p101, %p102
      %p105 = scmp.ne.s32.totalorder %s90, %s104
      %p106 = scmp.eq.s32.totalorder %s17, 0
      %p107 = por %p105, %p106
      %s109 = sadd.s32 %s108, 1
      %p112 = scmp.eq.s32.totalorder %s11, 3
      %p113 = scmp.ne.s32.totalorder %s108, %s110
      %p114 = scmp.eq.s32.totalorder %s11, 0
      %p115 = por %p113, %p114
      %p116 = scmp.ne.s32.totalorder %s108, %s110
      %p117 = scmp.eq.s32.totalorder %s16, 3
      %p118 = por %p116, %p117
      %p119 = scmp.ne.s32.totalorder %s110, %s111
      %p120 = scmp.eq.s32.totalorder %s16, 0
      %p121 = por %p119, %p120
      %p122 = scmp.ne.s32.totalorder %s110, %s111
      %p123 = scmp.eq.s32.totalorder %s17, 3
      %p124 = por %p122, %p123
      %p126 = scmp.ne.s32.totalorder %s111, %s125
      %p127 = scmp.eq.s32.totalorder %s17, 0
      %p128 = por %p126, %p127
      %s129 = ssub.s32 %s11, %s18
      %p130 = scmp.eq.s32.totalorder %s129, 0
      %s132 = sadd.s32 %s131, 1
      %s133 = scalar_select %p130, %s131, %s132
      %p136 = pneg %p130
      %p137 = scmp.eq.s32.totalorder %s11, 3
      %p138 = por %p136, %p137
      %p139 = scmp.ne.s32.totalorder %s131, %s134
      %p140 = scmp.eq.s32.totalorder %s11, 0
      %p141 = por %p139, %p140
      %p142 = scmp.ne.s32.totalorder %s131, %s134
      %p143 = scmp.eq.s32.totalorder %s16, 3
      %p144 = por %p142, %p143
      %p145 = scmp.ne.s32.totalorder %s134, %s135
      %p146 = scmp.eq.s32.totalorder %s16, 0
      %p147 = por %p145, %p146
      %p148 = scmp.ne.s32.totalorder %s134, %s135
      %p149 = scmp.eq.s32.totalorder %s17, 3
      %p150 = por %p148, %p149
      %p152 = scmp.ne.s32.totalorder %s135, %s151
      %p153 = scmp.eq.s32.totalorder %s17, 0
      %p154 = por %p152, %p153
      %p155 = scmp.le.s32.totalorder 1, %s11
      %p156 = scmp.lt.s32.totalorder %s11, 5
      %p157 = pnand %p155, %p156
      %p158 = pneg %p157
      // Predicated region
      $region9: #{dqn_forward.1} parent=5 // pred_check
        _
      $region10: #{dqn_forward.1} parent=5 // pred_check_branch
        %160 = sbr.rel (%p157) target = $region12
      $region11: #{dqn_forward.1} parent=5 // pred_region
        %s161 = ssub.s32 %s11, 1
        // Predicated region
        $region13: #{dqn_forward.1} parent=11 // pred_check
          %p162 = pneg %p58
        $region14: #{dqn_forward.1} parent=11 // pred_check_branch
          %164 = sbr.rel (%p162) target = $region16
        $region15: #{dqn_forward.1} parent=11 // pred_region
          _
        $region16: #{dqn_forward.1} parent=11 // pred_fallthru
          _
        // Predicated region
        $region17: #{dqn_forward.1} parent=11 // pred_check
          %p165 = pneg %p79
        $region18: #{dqn_forward.1} parent=11 // pred_check_branch
          %167 = sbr.rel (%p165) target = $region20
        $region19: #{dqn_forward.1} parent=11 // pred_region
          _
        $region20: #{dqn_forward.1} parent=11 // pred_fallthru
          _
        // Predicated region
        $region21: #{dqn_forward.1} parent=11 // pred_check
          %p168 = pneg %p100
        $region22: #{dqn_forward.1} parent=11 // pred_check_branch
          %170 = sbr.rel (%p168) target = $region24
        $region23: #{dqn_forward.1} parent=11 // pred_region
          _
        $region24: #{dqn_forward.1} parent=11 // pred_fallthru
          _
        // Predicated region
        $region25: #{dqn_forward.1} parent=11 // pred_check
          %p171 = pneg %p121
        $region26: #{dqn_forward.1} parent=11 // pred_check_branch
          %173 = sbr.rel (%p171) target = $region28
        $region27: #{dqn_forward.1} parent=11 // pred_region
          _
        $region28: #{dqn_forward.1} parent=11 // pred_fallthru
          _
      $region12: #{dqn_forward.1} parent=5 // pred_fallthru
        _
      %p174 = scmp.lt.s32.totalorder %s11, 4
      // Predicated region
      $region29: #{dqn_forward.1} parent=5 // pred_check
        %p175 = pneg %p174
      $region30: #{dqn_forward.1} parent=5 // pred_check_branch
        %177 = sbr.rel (%p175) target = $region32
      $region31: #{dqn_forward.1} parent=5 // pred_region
        // Predicated region
        $region33: #{dqn_forward.1} parent=31 // pred_check
          %p178 = pneg %p31
        $region34: #{dqn_forward.1} parent=31 // pred_check_branch
          %180 = sbr.rel (%p178) target = $region36
        $region35: #{dqn_forward.1} parent=31 // pred_region
          %s181 = smul.u32 2, %s11
          %s182 = ssub.s32 7, %s181
          %p183 = scmp.lt.s32.totalorder %s182, 2
          %s184 = scalar_select %p183, %s182, 2
          %s185 = smul.u32 128, %s184
          %p186 = scmp.lt.s32.totalorder %s181, 6
          %s187 = scalar_select %p186, %s181, 6
          %s188 = smul.addr %s187, 8
          %s189 = scalar_lea.vmem %s0, %s188
          %s190 = smul.u32 2, %s11
          %s191 = ssub.s32 7, %s190
          %p192 = scmp.lt.s32.totalorder %s191, 2
          %s193 = scalar_select %p192, %s191, 2
          %s194 = smul.u32 128, %s193
        $region36: #{dqn_forward.1} parent=31 // pred_fallthru
          _
      $region32: #{dqn_forward.1} parent=5 // pred_fallthru
        _
      %p195 = scmp.le.s32.totalorder 1, %s11
      %p196 = scmp.lt.s32.totalorder %s11, 5
      %p197 = pnand %p195, %p196
      %p198 = pneg %p197
      // Predicated region
      $region37: #{dqn_forward.1} parent=5 // pred_check
        _
      $region38: #{dqn_forward.1} parent=5 // pred_check_branch
        %200 = sbr.rel (%p197) target = $region40
      $region39: #{dqn_forward.1} parent=5 // pred_region
        %s201 = ssub.s32 %s11, 1
        %s202 = smul.u32 2, %s16
        %s203 = ssub.s32 7, %s202
        %p204 = scmp.lt.s32.totalorder %s203, 2
        %s205 = scalar_select %p204, %s203, 2
        %s206 = smul.u32 128, %s205
        %p207 = scmp.lt.s32.totalorder %s202, 6
        %s208 = scalar_select %p207, %s202, 6
        %s209 = smul.addr %s208, 8
        %s210 = scalar_lea.vmem %s0, %s209
        %p211 = pneg %p37
        %p212 = pneg %p34
        %p213 = pneg %p58
        %p214 = pneg %p55
        %p215 = pneg %p79
        %p216 = pneg %p76
        %p217 = pneg %p100
        %p218 = pneg %p97
        %p219 = pneg %p121
        %p220 = pneg %p118
        %p221 = pneg %p147
        %p222 = pneg %p144
        %s223 = sand.u32 %s134, 1
        %s224 = sand.u32 %s134, 1
        %s225 = smul.addr %s224, 16
        %s226 = scalar_lea.vmem [#allocation2], %s225
        %s227 = smul.u32 2, %s16
        %s228 = ssub.s32 7, %s227
        %p229 = scmp.lt.s32.totalorder %s228, 2
        %s230 = scalar_select %p229, %s228, 2
        %s231 = smul.u32 128, %s230
        %p232 = scmp.lt.s32.totalorder %s227, 6
        %s233 = scalar_select %p232, %s227, 6
        %s234 = smul.addr %s233, 8
        %s235 = scalar_lea.vmem %s0, %s234
        %s236 = smul.u32 2, %s16
        %s237 = ssub.s32 7, %s236
        %p238 = scmp.lt.s32.totalorder %s237, 2
        %s239 = scalar_select %p238, %s237, 2
        %s240 = smul.u32 128, %s239
        %s241 = smul.u32 2, %s16
        %s242 = ssub.s32 7, %s241
        %p243 = scmp.lt.s32.totalorder %s242, 2
        %s244 = scalar_select %p243, %s242, 2
        %s245 = smul.u32 128, %s244
        %v247 = vld [vmem:[%s235] sm:$0xff]
        %v248 = vld [vmem:[%s235 + $0x8] sm:$0xff]
        %v249 = vld [vmem:[%s1] sm:$0xf]
        %v250 = vld [vmem:[%s4] sm:$0x7]
        %252 = vset.pattern.permute.xlu0 0
        %253 = vperm.xlu0 %252, %v247
        %v254 = vpop.permute.xlu0 %253
        %257 = vset.pattern.permute.xlu0 0
        %258 = vperm.xlu0 %257, %v248
        %v259 = vpop.permute.xlu0 %258
        %v261 = vlaneseq
        %v262 = vshrl.u32 %v261, 7
        %v263 = vsub.s32 0, %v262
        %v264 = vrot.slane %v249, %v263
        %v265 = vmul.f32 %v254, %v264
        %v266 = vmul.f32 %v259, %v264
        %267 = vset.pattern.permute.xlu0 1
        %268 = vperm.xlu0 %267, %v247
        %v269 = vpop.permute.xlu0 %268
        %271 = vset.pattern.permute.xlu0 1
        %272 = vperm.xlu0 %271, %v248
        %v273 = vpop.permute.xlu0 %272
        %v275 = vlaneseq
        %v276 = vshrl.u32 %v275, 7
        %v277 = vsub.s32 1, %v276
        %v278 = vrot.slane %v249, %v277
        %v279 = vmul.f32 %v269, %v278
        %v280 = vmul.f32 %v273, %v278
        %v281 = vadd.f32 %v265, %v279
        %v282 = vadd.f32 %v266, %v280
        %283 = vset.pattern.permute.xlu0 2
        %284 = vperm.xlu0 %283, %v247
        %v285 = vpop.permute.xlu0 %284
        %287 = vset.pattern.permute.xlu0 2
        %288 = vperm.xlu0 %287, %v248
        %v289 = vpop.permute.xlu0 %288
        %v291 = vlaneseq
        %v292 = vshrl.u32 %v291, 7
        %v293 = vsub.s32 2, %v292
        %v294 = vrot.slane %v249, %v293
        %v295 = vmul.f32 %v285, %v294
        %v296 = vmul.f32 %v289, %v294
        %v297 = vadd.f32 %v281, %v295
        %v298 = vadd.f32 %v282, %v296
        %299 = vset.pattern.permute.xlu0 3
        %300 = vperm.xlu0 %299, %v247
        %v301 = vpop.permute.xlu0 %300
        %303 = vset.pattern.permute.xlu0 3
        %304 = vperm.xlu0 %303, %v248
        %v305 = vpop.permute.xlu0 %304
        %v307 = vlaneseq
        %v308 = vshrl.u32 %v307, 7
        %v309 = vsub.s32 3, %v308
        %v310 = vrot.slane %v249, %v309
        %v311 = vmul.f32 %v301, %v310
        %v312 = vmul.f32 %v305, %v310
        %v313 = vadd.f32 %v297, %v311
        %v314 = vadd.f32 %v298, %v312
        %v315 = vlaneseq
        %v316 = vshrl.u32 %v315, 7
        %v317 = vsub.s32 0, %v316
        %v318 = vrot.slane %v250, %v317
        %v319 = vadd.f32 %v313, %v318
        %v320 = vadd.f32 %v314, %v318
        %v321 = vmax.f32 %v319, 0.0
        %v322 = vmax.f32 %v320, 0.0
        %v323 = vpack.c.bf16 %v322, %v321
        %v324 = vld [vmem:[%s2] sm:$0xf]
        %v325 = vld [vmem:[%s2 + $0x4] sm:$0xf]
        %v326 = vld [vmem:[%s2 + $0x8] sm:$0xf]
        %v327 = vld [vmem:[%s2 + $0xc] sm:$0xf]
        %v328 = vld [vmem:[%s2 + $0x10] sm:$0xf]
        %v329 = vld [vmem:[%s2 + $0x14] sm:$0xf]
        %v330 = vld [vmem:[%s2 + $0x18] sm:$0xf]
        %v331 = vld [vmem:[%s2 + $0x1c] sm:$0xf]
        %v332 = vld [vmem:[%s2 + $0x20] sm:$0xf]
        %v333 = vld [vmem:[%s2 + $0x24] sm:$0xf]
        %v334 = vld [vmem:[%s2 + $0x28] sm:$0xf]
        %v335 = vld [vmem:[%s2 + $0x2c] sm:$0xf]
        %v336 = vld [vmem:[%s2 + $0x30] sm:$0xf]
        %v337 = vld [vmem:[%s2 + $0x34] sm:$0xf]
        %v338 = vld [vmem:[%s2 + $0x38] sm:$0xf]
        %v339 = vld [vmem:[%s2 + $0x3c] sm:$0xf]
        %v340 = vlaneseq
        %v341 = vshrl.u32 %v340, 7
        %v342 = vsub.s32 1, %v341
        %v343 = vrot.slane %v250, %v342
        %v360 = vunpack.c.l.b16 %v324
        %v361 = vunpack.c.l.b16 %v325
        %v362 = vunpack.c.l.b16 %v326
        %v363 = vunpack.c.l.b16 %v327
        %v364 = vunpack.c.l.b16 %v328
        %v365 = vunpack.c.l.b16 %v329
        %v366 = vunpack.c.l.b16 %v330
        %v367 = vunpack.c.l.b16 %v331
        %v368 = vunpack.c.l.b16 %v332
        %v369 = vunpack.c.l.b16 %v333
        %v370 = vunpack.c.l.b16 %v334
        %v371 = vunpack.c.l.b16 %v335
        %v372 = vunpack.c.l.b16 %v336
        %v373 = vunpack.c.l.b16 %v337
        %v374 = vunpack.c.l.b16 %v338
        %v375 = vunpack.c.l.b16 %v339
        %v376 = vpack.c.b16 %v361, %v360
        %v377 = vpack.c.b16 %v363, %v362
        %v378 = vpack.c.b16 %v365, %v364
        %v379 = vpack.c.b16 %v367, %v366
        %v380 = vpack.c.b16 %v369, %v368
        %v381 = vpack.c.b16 %v371, %v370
        %v382 = vpack.c.b16 %v373, %v372
        %v383 = vpack.c.b16 %v375, %v374
        %392 = vmatprep.subr.bf16.mxu0 0
        %393 = vmatpush1.bf16.msra.mxu0 %v383
        %394 = vmatprep.subr.bf16.mxu0 0
        %395 = vmatpush1.bf16.msra.mxu0 %v382
        %396 = vmatprep.subr.bf16.mxu0 0
        %397 = vmatpush1.bf16.msra.mxu0 %v381
        %398 = vmatprep.subr.bf16.mxu0 0
        %399 = vmatpush1.bf16.msra.mxu0 %v380
        %400 = vmatprep.subr.bf16.mxu0 0
        %401 = vmatpush1.bf16.msra.mxu0 %v379
        %402 = vmatprep.subr.bf16.mxu0 0
        %403 = vmatpush1.bf16.msra.mxu0 %v378
        %404 = vmatprep.subr.bf16.mxu0 0
        %405 = vmatpush1.bf16.msra.mxu0 %v377
        %406 = vmatprep.subr.bf16.mxu0 0
        %407 = vmatpush1.bf16.msra.mxu0 %v376
        %408 = vmatprep.subr.bf16.mxu0 0
        %409 = vmatpush2.bf16.msra.mxu0 0
        %410 = vmatprep.subr.bf16.mxu0 0
        %411 = vmatpush2.bf16.msra.mxu0 0
        %412 = vmatprep.subr.bf16.mxu0 0
        %413 = vmatpush2.bf16.msra.mxu0 0
        %414 = vmatprep.subr.bf16.mxu0 0
        %415 = vmatpush2.bf16.msra.mxu0 0
        %416 = vmatprep.subr.bf16.mxu0 0
        %417 = vmatpush2.bf16.msra.mxu0 0
        %418 = vmatprep.subr.bf16.mxu0 0
        %419 = vmatpush2.bf16.msra.mxu0 0
        %420 = vmatprep.subr.bf16.mxu0 0
        %421 = vmatpush2.bf16.msra.mxu0 0
        %422 = vmatprep.subr.bf16.mxu0 0
        %423 = vmatpush2.bf16.msra.mxu0 0
        %424 = vmatprep.mubr.bf16.mxu0 0
        %425 = vmatmul.mubr.bf16.gmra.mxu0 %v323
        %v426 = vpop.f32.mrf.mxu0
        %v427 = vadd.f32 %v343, %v426
        %v428 = vpop.f32.mrf.mxu0
        %v429 = vpop.f32.mrf.mxu0
        %v430 = vadd.f32 %v343, %v429
        %v431 = vpop.f32.mrf.mxu0
        %432 = vdwg.mxu0
        %v433 = vmax.f32 %v427, 0.0
        %v434 = vmax.f32 %v430, 0.0
        %v435 = vpack.c.bf16 %v434, %v433
        %v436 = vld [vmem:[%s3] sm:$0xf]
        %v437 = vld [vmem:[%s3 + $0x4] sm:$0xf]
        %v438 = vld [vmem:[%s3 + $0x8] sm:$0xf]
        %v439 = vld [vmem:[%s3 + $0xc] sm:$0xf]
        %v440 = vld [vmem:[%s3 + $0x10] sm:$0xf]
        %v441 = vld [vmem:[%s3 + $0x14] sm:$0xf]
        %v442 = vld [vmem:[%s3 + $0x18] sm:$0xf]
        %v443 = vld [vmem:[%s3 + $0x1c] sm:$0xf]
        %v444 = vld [vmem:[%s3 + $0x20] sm:$0xf]
        %v445 = vld [vmem:[%s3 + $0x24] sm:$0xf]
        %v446 = vld [vmem:[%s3 + $0x28] sm:$0xf]
        %v447 = vld [vmem:[%s3 + $0x2c] sm:$0xf]
        %v448 = vld [vmem:[%s3 + $0x30] sm:$0xf]
        %v449 = vld [vmem:[%s3 + $0x34] sm:$0xf]
        %v450 = vld [vmem:[%s3 + $0x38] sm:$0xf]
        %v451 = vld [vmem:[%s3 + $0x3c] sm:$0xf]
        %v468 = vunpack.c.l.b16 %v436
        %v469 = vunpack.c.l.b16 %v437
        %v470 = vunpack.c.l.b16 %v438
        %v471 = vunpack.c.l.b16 %v439
        %v472 = vunpack.c.l.b16 %v440
        %v473 = vunpack.c.l.b16 %v441
        %v474 = vunpack.c.l.b16 %v442
        %v475 = vunpack.c.l.b16 %v443
        %v476 = vunpack.c.l.b16 %v444
        %v477 = vunpack.c.l.b16 %v445
        %v478 = vunpack.c.l.b16 %v446
        %v479 = vunpack.c.l.b16 %v447
        %v480 = vunpack.c.l.b16 %v448
        %v481 = vunpack.c.l.b16 %v449
        %v482 = vunpack.c.l.b16 %v450
        %v483 = vunpack.c.l.b16 %v451
        %v484 = vpack.c.b16 %v469, %v468
        %v485 = vpack.c.b16 %v471, %v470
        %v486 = vpack.c.b16 %v473, %v472
        %v487 = vpack.c.b16 %v475, %v474
        %v488 = vpack.c.b16 %v477, %v476
        %v489 = vpack.c.b16 %v479, %v478
        %v490 = vpack.c.b16 %v481, %v480
        %v491 = vpack.c.b16 %v483, %v482
        %500 = vmatprep.subr.bf16.mxu0 0
        %501 = vmatpush1.bf16.msra.mxu0 %v491
        %502 = vmatprep.subr.bf16.mxu0 0
        %503 = vmatpush1.bf16.msra.mxu0 %v490
        %504 = vmatprep.subr.bf16.mxu0 0
        %505 = vmatpush1.bf16.msra.mxu0 %v489
        %506 = vmatprep.subr.bf16.mxu0 0
        %507 = vmatpush1.bf16.msra.mxu0 %v488
        %508 = vmatprep.subr.bf16.mxu0 0
        %509 = vmatpush1.bf16.msra.mxu0 %v487
        %510 = vmatprep.subr.bf16.mxu0 0
        %511 = vmatpush1.bf16.msra.mxu0 %v486
        %512 = vmatprep.subr.bf16.mxu0 0
        %513 = vmatpush1.bf16.msra.mxu0 %v485
        %514 = vmatprep.subr.bf16.mxu0 0
        %515 = vmatpush1.bf16.msra.mxu0 %v484
        %516 = vmatprep.subr.bf16.mxu0 0
        %517 = vmatpush2.bf16.msra.mxu0 0
        %518 = vmatprep.subr.bf16.mxu0 0
        %519 = vmatpush2.bf16.msra.mxu0 0
        %520 = vmatprep.subr.bf16.mxu0 0
        %521 = vmatpush2.bf16.msra.mxu0 0
        %522 = vmatprep.subr.bf16.mxu0 0
        %523 = vmatpush2.bf16.msra.mxu0 0
        %524 = vmatprep.subr.bf16.mxu0 0
        %525 = vmatpush2.bf16.msra.mxu0 0
        %526 = vmatprep.subr.bf16.mxu0 0
        %527 = vmatpush2.bf16.msra.mxu0 0
        %528 = vmatprep.subr.bf16.mxu0 0
        %529 = vmatpush2.bf16.msra.mxu0 0
        %530 = vmatprep.subr.bf16.mxu0 0
        %531 = vmatpush2.bf16.msra.mxu0 0
        %532 = vmatprep.mubr.bf16.mxu0 0
        %533 = vmatmul.mubr.bf16.gmra.mxu0 %v435
        %v534 = vpop.f32.mrf.mxu0
        %v535 = vadd.f32 0.0, %v534
        %v536 = vpop.f32.mrf.mxu0
        %v537 = vpop.f32.mrf.mxu0
        %v538 = vadd.f32 0.0, %v537
        %v539 = vpop.f32.mrf.mxu0
        %540 = vdwg.mxu0
        %v541 = vlaneseq
        %v542 = vshrl.u32 %v541, 7
        %v543 = vsub.s32 2, %v542
        %v544 = vrot.slane %v250, %v543
        %v545 = vadd.f32 %v535, %v544
        %v546 = vadd.f32 %v538, %v544
        %vm547 = vcmask 15360
        %548 = vst.msk [vmem:[%s226] sm:$0xff] %vm547, %v545
        %549 = vst.msk [vmem:[%s226 + $0x8] sm:$0xff] %vm547, %v546
        %s550 = sand.u32 %s134, 1
        %s551 = sand.u32 %s134, 1
        %s552 = smul.addr %s551, 16
        %s553 = scalar_lea.vmem [#allocation2], %s552
        // Predicated region
        $region41: #{dqn_forward.1} parent=39 // pred_check
          %p554 = pneg %p144
        $region42: #{dqn_forward.1} parent=39 // pred_check_branch
          %556 = sbr.rel (%p554) target = $region44
        $region43: #{dqn_forward.1} parent=39 // pred_region
          %s557 = smul.u32 2, %s16
          %s558 = ssub.s32 7, %s557
          %p559 = scmp.lt.s32.totalorder %s558, 2
          %s560 = scalar_select %p559, %s558, 2
          %s561 = smul.u32 128, %s560
          %p562 = scmp.ne.s32.totalorder 0, %s561
          %s563 = smul.addr %s557, 8
          %s564 = scalar_lea.vmem %s5, %s563
          // Predicated region
          $region45: #{dqn_forward.1} parent=43 // pred_check
            %p565 = pneg %p562
          $region46: #{dqn_forward.1} parent=43 // pred_check_branch
            %567 = sbr.rel (%p565) target = $region48
          $region47: #{dqn_forward.1} parent=43 // pred_region
            // Predicated region
            $region49: #{dqn_forward.1} parent=47 // pred_check
              _
            $region50: #{dqn_forward.1} parent=47 // pred_check_branch
              %569 = sbr.rel (0) target = $region52
            $region51: #{dqn_forward.1} parent=47 // pred_region
              // Predicated region
              $region71: #{dqn_forward.1} parent=51 // pred_check
                _
              $region72: #{dqn_forward.1} parent=51 // pred_check_branch
                %621 = sbr.rel (0) target = $region74
              $region73: #{dqn_forward.1} parent=51 // pred_region
                %s622 = sshrl.u32 %s560, 1
                // While loop
                $region75: #{dqn_forward.1} parent=73 // loop_pre_header
                  _
                $region76: #{dqn_forward.1} parent=73 // loop_header
                  %s624 = sphi 0, %s626
                  %p625 = scmp.ge.s32.totalorder %s624, %s622
                  %s629 = sphi 0, %s638
                  %s630 = sphi %s553, %s641
                  %s631 = sphi %s564, %s642
                $region77: #{dqn_forward.1} parent=73 // loop_header_branch
                  %628 = sbr.rel (%p625) target = $region81
                $region78: #{dqn_forward.1} parent=73 // loop_body
                  %v632 = vld [vmem:[%s630] sm:$0xff]
                  %633 = vst [vmem:[%s631] sm:$0xff] %v632
                  %v634 = vld [vmem:[%s630 + $0x8] sm:$0xff]
                  %635 = vst [vmem:[%s631 + $0x8] sm:$0xff] %v634
                  %s636 = sadd.s32 1, %s629
                  %p637 = scmp.ge.s32.totalorder %s636, %s622
                  %s638 = scalar_select %p637, 0, %s636
                  %s639 = smul.u32 %s638, 16
                  %s640 = smul.u32 %s638, 16
                  %s641 = scalar_lea.vmem %s553, %s639 [#allocation2]
                  %s642 = scalar_lea.vmem %s564, %s640
                $region79: #{dqn_forward.1} parent=73 // loop_footer
                  %s626 = sadd.s32 %s624, 1
                $region80: #{dqn_forward.1} parent=73 // loop_footer_branch
                  %623 = sbr.rel target = $region76
                $region81: #{dqn_forward.1} parent=73 // loop_exit
                  _
                %s643 = sshrl.u32 %s560, 1
                %s644 = sand.u32 %s560, 1
                %s645 = smul.u32 %s643, 2
                %s646 = smul.u32 8, %s645
                %s647 = scalar_lea.vmem %s553, %s646 [#allocation2]
                %s648 = smul.u32 8, %s645
                %s649 = scalar_lea.vmem %s564, %s648
                // While loop
                $region82: #{dqn_forward.1} parent=73 // loop_pre_header
                  _
                $region83: #{dqn_forward.1} parent=73 // loop_header
                  %s651 = sphi 0, %s653
                  %p652 = scmp.ge.s32.totalorder %s651, %s644
                  %s656 = sphi 0, %s663
                  %s657 = sphi %s647, %s666
                  %s658 = sphi %s649, %s667
                $region84: #{dqn_forward.1} parent=73 // loop_header_branch
                  %655 = sbr.rel (%p652) target = $region88
                $region85: #{dqn_forward.1} parent=73 // loop_body
                  %v659 = vld [vmem:[%s657] sm:$0xff]
                  %660 = vst [vmem:[%s658] sm:$0xff] %v659
                  %s661 = sadd.s32 1, %s656
                  %p662 = scmp.ge.s32.totalorder %s661, %s644
                  %s663 = scalar_select %p662, 0, %s661
                  %s664 = smul.u32 %s663, 8
                  %s665 = smul.u32 %s663, 8
                  %s666 = scalar_lea.vmem %s647, %s664 [#allocation2]
                  %s667 = scalar_lea.vmem %s649, %s665
                $region86: #{dqn_forward.1} parent=73 // loop_footer
                  %s653 = sadd.s32 %s651, 1
                $region87: #{dqn_forward.1} parent=73 // loop_footer_branch
                  %650 = sbr.rel target = $region83
                $region88: #{dqn_forward.1} parent=73 // loop_exit
                  _
              $region74: #{dqn_forward.1} parent=51 // pred_fallthru
                _
              // Predicated region
              $region89: #{dqn_forward.1} parent=51 // pred_check
                _
              $region90: #{dqn_forward.1} parent=51 // pred_check_branch
                %669 = sbr.rel target = $region92
              $region91: #{dqn_forward.1} parent=51 // pred_region
                _
              $region92: #{dqn_forward.1} parent=51 // pred_fallthru
                _
            $region52: #{dqn_forward.1} parent=47 // pred_fallthru
              _
            // Predicated region
            $region53: #{dqn_forward.1} parent=47 // pred_check
              _
            $region54: #{dqn_forward.1} parent=47 // pred_check_branch
              %571 = sbr.rel target = $region56
            $region55: #{dqn_forward.1} parent=47 // pred_region
              %s573 = ssub.s32 256, 1
              %s574 = sshrl.u32 %s560, 1
              // While loop
              $region57: #{dqn_forward.1} parent=55 // loop_pre_header
                _
              $region58: #{dqn_forward.1} parent=55 // loop_header
                %s576 = sphi 0, %s578
                %p577 = scmp.ge.s32.totalorder %s576, %s574
                %s581 = sphi 0, %s590
                %s582 = sphi %s553, %s593
                %s583 = sphi %s564, %s594
              $region59: #{dqn_forward.1} parent=55 // loop_header_branch
                %580 = sbr.rel (%p577) target = $region63
              $region60: #{dqn_forward.1} parent=55 // loop_body
                %v584 = vld [vmem:[%s582] sm:%s573]
                %585 = vst [vmem:[%s583] sm:%s573] %v584
                %v586 = vld [vmem:[%s582 + $0x8] sm:%s573]
                %587 = vst [vmem:[%s583 + $0x8] sm:%s573] %v586
                %s588 = sadd.s32 1, %s581
                %p589 = scmp.ge.s32.totalorder %s588, %s574
                %s590 = scalar_select %p589, 0, %s588
                %s591 = smul.u32 %s590, 16
                %s592 = smul.u32 %s590, 16
                %s593 = scalar_lea.vmem %s553, %s591 [#allocation2]
                %s594 = scalar_lea.vmem %s564, %s592
              $region61: #{dqn_forward.1} parent=55 // loop_footer
                %s578 = sadd.s32 %s576, 1
              $region62: #{dqn_forward.1} parent=55 // loop_footer_branch
                %575 = sbr.rel target = $region58
              $region63: #{dqn_forward.1} parent=55 // loop_exit
                _
              %s595 = sshrl.u32 %s560, 1
              %s596 = sand.u32 %s560, 1
              %s597 = smul.u32 %s595, 2
              %s598 = smul.u32 8, %s597
              %s599 = scalar_lea.vmem %s553, %s598 [#allocation2]
              %s600 = smul.u32 8, %s597
              %s601 = scalar_lea.vmem %s564, %s600
              // While loop
              $region64: #{dqn_forward.1} parent=55 // loop_pre_header
                _
              $region65: #{dqn_forward.1} parent=55 // loop_header
                %s603 = sphi 0, %s605
                %p604 = scmp.ge.s32.totalorder %s603, %s596
                %s608 = sphi 0, %s615
                %s609 = sphi %s599, %s618
                %s610 = sphi %s601, %s619
              $region66: #{dqn_forward.1} parent=55 // loop_header_branch
                %607 = sbr.rel (%p604) target = $region70
              $region67: #{dqn_forward.1} parent=55 // loop_body
                %v611 = vld [vmem:[%s609] sm:%s573]
                %612 = vst [vmem:[%s610] sm:%s573] %v611
                %s613 = sadd.s32 1, %s608
                %p614 = scmp.ge.s32.totalorder %s613, %s596
                %s615 = scalar_select %p614, 0, %s613
                %s616 = smul.u32 %s615, 8
                %s617 = smul.u32 %s615, 8
                %s618 = scalar_lea.vmem %s599, %s616 [#allocation2]
                %s619 = scalar_lea.vmem %s601, %s617
              $region68: #{dqn_forward.1} parent=55 // loop_footer
                %s605 = sadd.s32 %s603, 1
              $region69: #{dqn_forward.1} parent=55 // loop_footer_branch
                %602 = sbr.rel target = $region65
              $region70: #{dqn_forward.1} parent=55 // loop_exit
                _
            $region56: #{dqn_forward.1} parent=47 // pred_fallthru
              _
          $region48: #{dqn_forward.1} parent=43 // pred_fallthru
            _
          %670 = vnop
        $region44: #{dqn_forward.1} parent=39 // pred_fallthru
          _
      $region40: #{dqn_forward.1} parent=5 // pred_fallthru
        _
      %p671 = scmp.le.s32.totalorder 2, %s11
      // Predicated region
      $region93: #{dqn_forward.1} parent=5 // pred_check
        %p672 = pneg %p671
      $region94: #{dqn_forward.1} parent=5 // pred_check_branch
        %674 = sbr.rel (%p672) target = $region96
      $region95: #{dqn_forward.1} parent=5 // pred_region
        %s675 = ssub.s32 %s11, 2
        // Predicated region
        $region97: #{dqn_forward.1} parent=95 // pred_check
          %p676 = pneg %p150
        $region98: #{dqn_forward.1} parent=95 // pred_check_branch
          %678 = sbr.rel (%p676) target = $region100
        $region99: #{dqn_forward.1} parent=95 // pred_region
          %s679 = sand.u32 %s135, 1
          %s680 = sand.u32 %s135, 1
          %s681 = smul.addr %s680, 16
          %s682 = scalar_lea.vmem [#allocation2], %s681
        $region100: #{dqn_forward.1} parent=95 // pred_fallthru
          _
      $region96: #{dqn_forward.1} parent=5 // pred_fallthru
        _
    $region6: #{dqn_forward.1} parent=1 // loop_footer
      %s15 = sadd.s32 1, %s11
    $region7: #{dqn_forward.1} parent=1 // loop_footer_branch
      %10 = sbr.rel target = $region3
    $region8: #{dqn_forward.1} parent=1 // loop_exit
      _

</llo_original>
